<compile_context>
chip_gen: v7x
topology: tpu7x:2x2x1
jax: 0.10.0
libtpu: 0.0.40
codegen_flags: <defaults>
</compile_context>

<pallas_src>
import functools

import jax
import jax.numpy as jnp
from jax.experimental import pallas as pl
from jax.experimental.pallas import tpu as pltpu


def _conv_x2_kernel(x_ref, m1_ref, b1_ref, m2_ref, b2_ref, o_ref, *, K, H1, H2):
    """Both conv+ReLU stages for one block of batch elements.

    x_ref : (Bblk, H, W*Cin)   compute dtype (bf16 by default)
    m1_ref: (K, W*Cin, L1)     conv1 block-Toeplitz weights (kw, ci taps folded in)
    b1_ref: (1, L1)  f32       conv1 bias tiled along the (w, cout) lane axis
    m2_ref: (K, L1, L2)        conv2 block-Toeplitz weights
    b2_ref: (1, L2)  f32
    o_ref : (Bblk, H2, L2)     L2 is a multiple of 128 -> lane-dense stores
    """
    Bblk, H, Wc = x_ref.shape
    L1 = m1_ref.shape[2]
    L2 = m2_ref.shape[2]

    # Collapse leading dims only (last dim unchanged -> no lane relayout).
    x = x_ref[...].reshape(Bblk * H, Wc)

    # ---- conv1: out[h, w*Co+co] = sum_kh (x_row[h+kh] @ m1[kh])[w*Co+co] ----
    acc1 = None
    for kh in range(K):
        p = jnp.dot(x, m1_ref[kh], preferred_element_type=jnp.float32)
        # Static sublane shift: row h of the output takes row h+kh of this tap.
        p = p.reshape(Bblk, H, L1)[:, kh:kh + H1, :]
        acc1 = p if acc1 is None else acc1 + p
    h1 = jnp.maximum(acc1 + b1_ref[...], 0.0)            # (Bblk, H1, L1) f32
    h1 = h1.astype(x.dtype).reshape(Bblk * H1, L1)       # low-precision MXU operand

    # ---- conv2: identical structure on the H1-row intermediate ----
    acc2 = None
    for kh in range(K):
        q = jnp.dot(h1, m2_ref[kh], preferred_element_type=jnp.float32)
        q = q.reshape(Bblk, H1, L2)[:, kh:kh + H2, :]
        acc2 = q if acc2 is None else acc2 + q
    out = jnp.maximum(acc2 + b2_ref[...], 0.0)           # (Bblk, H2, L2) f32
    o_ref[...] = out.astype(o_ref.dtype)


def _round_up(x, m):
    return ((x + m - 1) // m) * m


def _row_toeplitz(w_hwio, w_in, w_out, rows_pad, lanes_pad):
    """Fold the (kw, cin) taps of a KxK 'valid' conv into K block-Toeplitz matrices.

    M[kh, wi*Cin + ci, wo*Cout + co] = w_hwio[kh, wi - wo, ci, co]   (0 <= wi - wo < K)
    so the conv becomes:  out[h, wo*Cout + co] = sum_kh (x_row[h + kh] @ M[kh]).
    Rows/lanes are zero-padded to (rows_pad, lanes_pad) so each M[kh] is a clean
    (.., 128)-wide VMEM tile.
    """
    K, _, Cin, Cout = w_hwio.shape
    wi = jnp.arange(w_in)[:, None]                       # (w_in, 1)
    wo = jnp.arange(w_out)[None, :]                      # (1, w_out)
    kw = wi - wo                                         # (w_in, w_out)
    valid = (kw >= 0) & (kw < K)
    g = w_hwio[:, jnp.clip(kw, 0, K - 1)]                # (K, w_in, w_out, Cin, Cout)
    g = jnp.where(valid[None, :, :, None, None], g, 0.0)
    m = g.transpose(0, 1, 3, 2, 4).reshape(K, w_in * Cin, w_out * Cout)
    return jnp.pad(m, ((0, 0),
                       (0, rows_pad - w_in * Cin),
                       (0, lanes_pad - w_out * Cout)))


@functools.partial(jax.jit, static_argnames=("ker_size", "block_batch", "compute_dtype"))
def conv_x2(x_nchw, w1, b1, w2, b2, *, ker_size=3, block_batch=None,
            compute_dtype=jnp.bfloat16):
    """x_nchw: (N, Cin, H, W); w1: (Cout, Cin, K, K); w2: (Cout, Cout, K, K)."""
    K = ker_size
    N, Cin, H, W = x_nchw.shape
    Cout = w1.shape[0]
    H1, W1 = H - K + 1, W - K + 1
    H2, W2 = H1 - K + 1, W1 - K + 1
    LANE = 128
    L1 = _round_up(W1 * Cout, LANE)      # conv1 output lane width (128 here)
    L2 = _round_up(W2 * Cout, LANE)      # conv2 output lane width (128 here)

    # Batch packing: enlarge the matmul M dim, but keep >= 2 grid steps when N >= 2
    # so both v7x TensorCores get work (near-neutral on single-TC v5e/v6e).
    if block_batch is None:
        target = max(1, min(8, N // 2))
        block_batch = next(d for d in range(target, 0, -1) if N % d == 0)
    assert N % block_batch == 0, (N, block_batch)

    # NCHW -> (N, H, W*Cin) row slabs (the contiguous NHWC flattening); bf16 operands.
    # TODO(synk): in a real pipeline keep activations NHWC end-to-end so this transpose
    # (and the final one back to NCHW) disappears instead of being paid per call.
    x_rows = jnp.transpose(x_nchw, (0, 2, 3, 1)).reshape(N, H, W * Cin)
    x_rows = x_rows.astype(compute_dtype)

    # OIHW -> HWIO, then fold the (kw, ci) taps into K lane-padded Toeplitz matrices.
    w1_hwio = jnp.transpose(w1, (2, 3, 1, 0))
    w2_hwio = jnp.transpose(w2, (2, 3, 1, 0))
    m1 = _row_toeplitz(w1_hwio, W, W1, W * Cin, L1).astype(compute_dtype)   # (K, W*Cin, L1)
    m2 = _row_toeplitz(w2_hwio, W1, W2, L1, L2).astype(compute_dtype)       # (K, L1, L2)
    b1r = jnp.pad(jnp.tile(b1, W1), (0, L1 - W1 * Cout)).reshape(1, L1).astype(jnp.float32)
    b2r = jnp.pad(jnp.tile(b2, W2), (0, L2 - W2 * Cout)).reshape(1, L2).astype(jnp.float32)

    kernel = functools.partial(_conv_x2_kernel, K=K, H1=H1, H2=H2)
    out_rows = pl.pallas_call(
        kernel,
        out_shape=jax.ShapeDtypeStruct((N, H2, L2), x_nchw.dtype),
        grid_spec=pltpu.PrefetchScalarGridSpec(
            num_scalar_prefetch=0,
            grid=(N // block_batch,),
            in_specs=[
                pl.BlockSpec((block_batch, H, W * Cin), lambda b: (b, 0, 0)),
                pl.BlockSpec((K, W * Cin, L1), lambda b: (0, 0, 0)),
                pl.BlockSpec((1, L1), lambda b: (0, 0)),
                pl.BlockSpec((K, L1, L2), lambda b: (0, 0, 0)),
                pl.BlockSpec((1, L2), lambda b: (0, 0)),
            ],
            out_specs=pl.BlockSpec((block_batch, H2, L2), lambda b: (b, 0, 0)),
        ),
        compiler_params=pltpu.CompilerParams(
            dimension_semantics=("parallel",)),
    )(x_rows, m1, b1r, m2, b2r)

    # Drop the lane padding, then back to the PyTorch NCHW convention.
    out = out_rows[:, :, :W2 * Cout].reshape(N, H2, W2, Cout)
    return jnp.transpose(out, (0, 3, 1, 2))


def _init_params(key, in_ch, out_ch, ker_size=3):
    """Deterministic init mimicking PyTorch Conv2d default (uniform +/- 1/sqrt(fan_in))."""
    k1, k2, k3, k4 = jax.random.split(key, 4)
    fan1 = in_ch * ker_size * ker_size
    fan2 = out_ch * ker_size * ker_size
    bnd1 = 1.0 / jnp.sqrt(jnp.float32(fan1))
    bnd2 = 1.0 / jnp.sqrt(jnp.float32(fan2))
    w1 = jax.random.uniform(k1, (out_ch, in_ch, ker_size, ker_size),
                            jnp.float32, -bnd1, bnd1)
    b1 = jax.random.uniform(k2, (out_ch,), jnp.float32, -bnd1, bnd1)
    w2 = jax.random.uniform(k3, (out_ch, out_ch, ker_size, ker_size),
                            jnp.float32, -bnd2, bnd2)
    b2 = jax.random.uniform(k4, (out_ch,), jnp.float32, -bnd2, bnd2)
    return w1, b1, w2, b2


def _reference(x_nchw, w1, b1, w2, b2):
    dn = ("NCHW", "OIHW", "NCHW")
    y = jax.lax.conv_general_dilated(x_nchw, w1, (1, 1), "VALID",
                                     dimension_numbers=dn)
    y = jnp.maximum(y + b1[None, :, None, None], 0.0)
    y = jax.lax.conv_general_dilated(y, w2, (1, 1), "VALID",
                                     dimension_numbers=dn)
    return jnp.maximum(y + b2[None, :, None, None], 0.0)


if __name__ == "__main__":
    key = jax.random.PRNGKey(0)
    k_x, k_p = jax.random.split(key)

    in_ch, out_ch, ker = 4, 8, 3
    x = jax.random.normal(k_x, (2, in_ch, 16, 16), jnp.float32)  # NCHW
    w1, b1, w2, b2 = _init_params(k_p, in_ch, out_ch, ker)

    y = conv_x2(x, w1, b1, w2, b2, ker_size=ker)
    y = jax.block_until_ready(y)

    y_ref = _reference(x, w1, b1, w2, b2)
    assert y.shape == (2, out_ch, 12, 12), y.shape
    # bf16 MXU operands with f32 accumulation -> tolerance loosened vs pure-f32 path.
    assert jnp.allclose(y, y_ref, atol=3e-2, rtol=3e-2), \
        float(jnp.max(jnp.abs(y - y_ref)))

    print("KERNEL_OK")
</pallas_src>

<mosaic_0001>
module attributes {stable_mosaic.version = 11 : i64} {
  func.func @_conv_x2_kernel(%arg0: i32, %arg1: memref<1x16x64xbf16, #tpu.memory_space<vmem>>, %arg2: memref<3x64x128xbf16, #tpu.memory_space<vmem>>, %arg3: memref<1x128xf32, #tpu.memory_space<vmem>>, %arg4: memref<3x128x128xbf16, #tpu.memory_space<vmem>>, %arg5: memref<1x128xf32, #tpu.memory_space<vmem>>, %arg6: memref<1x12x128xf32, #tpu.memory_space<vmem>>) attributes {dimension_semantics = [#tpu.dimension_semantics<parallel>], iteration_bounds = array<i64: 2>, scalar_prefetch = 0 : i64, scratch_operands = 0 : i64, tpu.core_type = #tpu.core_type<tc>, window_params = [{transform_indices = @transform_0, window_bounds = array<i64: 1, 16, 64>}, {pipeline_mode = #tpu.pipeline_mode<synchronous>, transform_indices = @transform_1, window_bounds = array<i64: 3, 64, 128>}, {pipeline_mode = #tpu.pipeline_mode<synchronous>, transform_indices = @transform_2, window_bounds = array<i64: 1, 128>}, {pipeline_mode = #tpu.pipeline_mode<synchronous>, transform_indices = @transform_3, window_bounds = array<i64: 3, 128, 128>}, {pipeline_mode = #tpu.pipeline_mode<synchronous>, transform_indices = @transform_4, window_bounds = array<i64: 1, 128>}, {transform_indices = @transform_5, window_bounds = array<i64: 1, 12, 128>}]} {
    %c0 = arith.constant 0 : index
    %c0_0 = arith.constant 0 : index
    %c0_1 = arith.constant 0 : index
    %0 = vector.load %arg1[%c0, %c0_0, %c0_1] : memref<1x16x64xbf16, #tpu.memory_space<vmem>>, vector<1x16x64xbf16>
    %1 = vector.shape_cast %0 : vector<1x16x64xbf16> to vector<16x64xbf16>
    %c0_2 = arith.constant 0 : index
    %c0_3 = arith.constant 0 : index
    %c0_4 = arith.constant 0 : index
    %2 = vector.load %arg2[%c0_2, %c0_3, %c0_4] : memref<3x64x128xbf16, #tpu.memory_space<vmem>>, vector<1x64x128xbf16>
    %3 = vector.shape_cast %2 : vector<1x64x128xbf16> to vector<64x128xbf16>
    %cst = arith.constant dense<0.000000e+00> : vector<16x128xf32>
    %4 = tpu.matmul %1, %3, %cst {dimension_numbers = #tpu.dot_dimension_numbers<[1], [0], [0], [1], [0, 0, 1, 1], [], []>} : vector<16x64xbf16>, vector<64x128xbf16>, vector<16x128xf32> -> vector<16x128xf32>
    %5 = vector.shape_cast %4 : vector<16x128xf32> to vector<1x16x128xf32>
    %6 = vector.extract_strided_slice %5 {offsets = [0, 0, 0], sizes = [1, 14, 128], strides = [1, 1, 1]} : vector<1x16x128xf32> to vector<1x14x128xf32>
    %c1 = arith.constant 1 : index
    %c0_5 = arith.constant 0 : index
    %c0_6 = arith.constant 0 : index
    %7 = vector.load %arg2[%c1, %c0_5, %c0_6] : memref<3x64x128xbf16, #tpu.memory_space<vmem>>, vector<1x64x128xbf16>
    %8 = vector.shape_cast %7 : vector<1x64x128xbf16> to vector<64x128xbf16>
    %cst_7 = arith.constant dense<0.000000e+00> : vector<16x128xf32>
    %9 = tpu.matmul %1, %8, %cst_7 {dimension_numbers = #tpu.dot_dimension_numbers<[1], [0], [0], [1], [0, 0, 1, 1], [], []>} : vector<16x64xbf16>, vector<64x128xbf16>, vector<16x128xf32> -> vector<16x128xf32>
    %10 = vector.shape_cast %9 : vector<16x128xf32> to vector<1x16x128xf32>
    %11 = vector.extract_strided_slice %10 {offsets = [0, 1, 0], sizes = [1, 14, 128], strides = [1, 1, 1]} : vector<1x16x128xf32> to vector<1x14x128xf32>
    %12 = arith.addf %6, %11 : vector<1x14x128xf32>
    %c2 = arith.constant 2 : index
    %c0_8 = arith.constant 0 : index
    %c0_9 = arith.constant 0 : index
    %13 = vector.load %arg2[%c2, %c0_8, %c0_9] : memref<3x64x128xbf16, #tpu.memory_space<vmem>>, vector<1x64x128xbf16>
    %14 = vector.shape_cast %13 : vector<1x64x128xbf16> to vector<64x128xbf16>
    %cst_10 = arith.constant dense<0.000000e+00> : vector<16x128xf32>
    %15 = tpu.matmul %1, %14, %cst_10 {dimension_numbers = #tpu.dot_dimension_numbers<[1], [0], [0], [1], [0, 0, 1, 1], [], []>} : vector<16x64xbf16>, vector<64x128xbf16>, vector<16x128xf32> -> vector<16x128xf32>
    %16 = vector.shape_cast %15 : vector<16x128xf32> to vector<1x16x128xf32>
    %17 = vector.extract_strided_slice %16 {offsets = [0, 2, 0], sizes = [1, 14, 128], strides = [1, 1, 1]} : vector<1x16x128xf32> to vector<1x14x128xf32>
    %18 = arith.addf %12, %17 : vector<1x14x128xf32>
    %c0_11 = arith.constant 0 : index
    %c0_12 = arith.constant 0 : index
    %19 = vector.load %arg3[%c0_11, %c0_12] : memref<1x128xf32, #tpu.memory_space<vmem>>, vector<1x128xf32>
    %20 = vector.shape_cast %19 : vector<1x128xf32> to vector<1x1x128xf32>
    %21 = vector.broadcast %20 : vector<1x1x128xf32> to vector<1x14x128xf32>
    %22 = arith.addf %18, %21 : vector<1x14x128xf32>
    %cst_13 = arith.constant 0.000000e+00 : f32
    %23 = vector.broadcast %cst_13 : f32 to vector<1x14x128xf32>
    %24 = arith.maximumf %22, %23 : vector<1x14x128xf32>
    %25 = arith.truncf %24 : vector<1x14x128xf32> to vector<1x14x128xbf16>
    %26 = vector.shape_cast %25 : vector<1x14x128xbf16> to vector<14x128xbf16>
    %c0_14 = arith.constant 0 : index
    %c0_15 = arith.constant 0 : index
    %c0_16 = arith.constant 0 : index
    %27 = vector.load %arg4[%c0_14, %c0_15, %c0_16] : memref<3x128x128xbf16, #tpu.memory_space<vmem>>, vector<1x128x128xbf16>
    %28 = vector.shape_cast %27 : vector<1x128x128xbf16> to vector<128x128xbf16>
    %cst_17 = arith.constant dense<0.000000e+00> : vector<14x128xf32>
    %29 = tpu.matmul %26, %28, %cst_17 {dimension_numbers = #tpu.dot_dimension_numbers<[1], [0], [0], [1], [0, 0, 1, 1], [], []>} : vector<14x128xbf16>, vector<128x128xbf16>, vector<14x128xf32> -> vector<14x128xf32>
    %30 = vector.shape_cast %29 : vector<14x128xf32> to vector<1x14x128xf32>
    %31 = vector.extract_strided_slice %30 {offsets = [0, 0, 0], sizes = [1, 12, 128], strides = [1, 1, 1]} : vector<1x14x128xf32> to vector<1x12x128xf32>
    %c1_18 = arith.constant 1 : index
    %c0_19 = arith.constant 0 : index
    %c0_20 = arith.constant 0 : index
    %32 = vector.load %arg4[%c1_18, %c0_19, %c0_20] : memref<3x128x128xbf16, #tpu.memory_space<vmem>>, vector<1x128x128xbf16>
    %33 = vector.shape_cast %32 : vector<1x128x128xbf16> to vector<128x128xbf16>
    %cst_21 = arith.constant dense<0.000000e+00> : vector<14x128xf32>
    %34 = tpu.matmul %26, %33, %cst_21 {dimension_numbers = #tpu.dot_dimension_numbers<[1], [0], [0], [1], [0, 0, 1, 1], [], []>} : vector<14x128xbf16>, vector<128x128xbf16>, vector<14x128xf32> -> vector<14x128xf32>
    %35 = vector.shape_cast %34 : vector<14x128xf32> to vector<1x14x128xf32>
    %36 = vector.extract_strided_slice %35 {offsets = [0, 1, 0], sizes = [1, 12, 128], strides = [1, 1, 1]} : vector<1x14x128xf32> to vector<1x12x128xf32>
    %37 = arith.addf %31, %36 : vector<1x12x128xf32>
    %c2_22 = arith.constant 2 : index
    %c0_23 = arith.constant 0 : index
    %c0_24 = arith.constant 0 : index
    %38 = vector.load %arg4[%c2_22, %c0_23, %c0_24] : memref<3x128x128xbf16, #tpu.memory_space<vmem>>, vector<1x128x128xbf16>
    %39 = vector.shape_cast %38 : vector<1x128x128xbf16> to vector<128x128xbf16>
    %cst_25 = arith.constant dense<0.000000e+00> : vector<14x128xf32>
    %40 = tpu.matmul %26, %39, %cst_25 {dimension_numbers = #tpu.dot_dimension_numbers<[1], [0], [0], [1], [0, 0, 1, 1], [], []>} : vector<14x128xbf16>, vector<128x128xbf16>, vector<14x128xf32> -> vector<14x128xf32>
    %41 = vector.shape_cast %40 : vector<14x128xf32> to vector<1x14x128xf32>
    %42 = vector.extract_strided_slice %41 {offsets = [0, 2, 0], sizes = [1, 12, 128], strides = [1, 1, 1]} : vector<1x14x128xf32> to vector<1x12x128xf32>
    %43 = arith.addf %37, %42 : vector<1x12x128xf32>
    %c0_26 = arith.constant 0 : index
    %c0_27 = arith.constant 0 : index
    %44 = vector.load %arg5[%c0_26, %c0_27] : memref<1x128xf32, #tpu.memory_space<vmem>>, vector<1x128xf32>
    %45 = vector.shape_cast %44 : vector<1x128xf32> to vector<1x1x128xf32>
    %46 = vector.broadcast %45 : vector<1x1x128xf32> to vector<1x12x128xf32>
    %47 = arith.addf %43, %46 : vector<1x12x128xf32>
    %cst_28 = arith.constant 0.000000e+00 : f32
    %48 = vector.broadcast %cst_28 : f32 to vector<1x12x128xf32>
    %49 = arith.maximumf %47, %48 : vector<1x12x128xf32>
    %c0_29 = arith.constant 0 : index
    %c0_30 = arith.constant 0 : index
    %c0_31 = arith.constant 0 : index
    %50 = vector.load %arg6[%c0_29, %c0_30, %c0_31] : memref<1x12x128xf32, #tpu.memory_space<vmem>>, vector<1x12x128xf32>
    tpu.vector_store %arg6[%c0_29, %c0_30, %c0_31], %49 {strides = array<i32>} : memref<1x12x128xf32, #tpu.memory_space<vmem>>, vector<1x12x128xf32>,
    return
  }
  func.func @transform_0(%arg0: i32) -> (i32, i32, i32) {
    %c0_i32 = arith.constant 0 : i32
    %c0_i32_0 = arith.constant 0 : i32
    %c0_i32_1 = arith.constant 0 : i32
    return %arg0, %c0_i32, %c0_i32_0 : i32, i32, i32
  }
  func.func @transform_1(%arg0: i32) -> (i32, i32, i32) {
    %c0_i32 = arith.constant 0 : i32
    %c0_i32_0 = arith.constant 0 : i32
    %c0_i32_1 = arith.constant 0 : i32
    %c0_i32_2 = arith.constant 0 : i32
    return %c0_i32, %c0_i32_0, %c0_i32_1 : i32, i32, i32
  }
  func.func @transform_2(%arg0: i32) -> (i32, i32) {
    %c0_i32 = arith.constant 0 : i32
    %c0_i32_0 = arith.constant 0 : i32
    %c0_i32_1 = arith.constant 0 : i32
    return %c0_i32, %c0_i32_0 : i32, i32
  }
  func.func @transform_3(%arg0: i32) -> (i32, i32, i32) {
    %c0_i32 = arith.constant 0 : i32
    %c0_i32_0 = arith.constant 0 : i32
    %c0_i32_1 = arith.constant 0 : i32
    %c0_i32_2 = arith.constant 0 : i32
    return %c0_i32, %c0_i32_0, %c0_i32_1 : i32, i32, i32
  }
  func.func @transform_4(%arg0: i32) -> (i32, i32) {
    %c0_i32 = arith.constant 0 : i32
    %c0_i32_0 = arith.constant 0 : i32
    %c0_i32_1 = arith.constant 0 : i32
    return %c0_i32, %c0_i32_0 : i32, i32
  }
  func.func @transform_5(%arg0: i32) -> (i32, i32, i32) {
    %c0_i32 = arith.constant 0 : i32
    %c0_i32_0 = arith.constant 0 : i32
    %c0_i32_1 = arith.constant 0 : i32
    return %arg0, %c0_i32, %c0_i32_0 : i32, i32, i32
  }
}

</mosaic_0001>

<llo_original>
// kernel: tile.18
$region0: #{tile.18}
  #allocation2 [shape = 's32[1]{0}', space=sflag, size = 0x4, scoped, tag = 'scoped memory for tile.18']
  %s0 = inlined_call_operand.hbm [shape: f32[8], index: 0, kind: input, shape index: {}]
  %s1 = inlined_call_operand.vmem [shape: f32[12,8], index: 1, kind: output, shape index: {}]
  $region1: #{tile.18} parent=0
    #allocation0 [shape = 'u8[512]{0}', space=vmem, size = 0x400, scoped, tag = 'operand span for operand 0']
    #allocation1 [shape = 's32[1]{0}', space=sflag, size = 0x4, scoped, tag = 'scoped memory for tile.18']
    %2 = vsyncpa [#allocation1], 0
    // Predicated region
    $region2: #{tile.18} parent=1 // pred_check
      _
    $region3: #{tile.18} parent=1 // pred_check_branch
      %4 = sbr.rel (0) target = $region5
    $region4: #{tile.18} parent=1 // pred_region
      %s6 = ssub.s32 16, 16
      %7 = vsyncadd [#allocation1], %s6
      %s9 = sshll.u32 [#allocation0], 4
      %s10 = int_to_ptr.vmem [resolvable:$true] %s9
      %12 = dma.hbm_to_vmem [thread:$0]  %s0, 16, %s10, [#allocation1]
    $region5: #{tile.18} parent=1 // pred_fallthru
      _
    // Predicated region
    $region6: #{tile.18} parent=1 // pred_check
      _
    $region7: #{tile.18} parent=1 // pred_check_branch
      %14 = sbr.rel (0) target = $region9
    $region8: #{tile.18} parent=1 // pred_region
      %15 = dma.done [#allocation1], 16
    $region9: #{tile.18} parent=1 // pred_fallthru
      _
    %v16 = vld [vmem:[#allocation0] ss:$0 sm:$0xff]
    %17 = vst [vmem:[%s1] sm:$0xff] %v16
    %s18 = scalar_lea.vmem %s1, 8
    %19 = vst [vmem:[%s18] sm:$0xff] %v16
    %20 = vsyncpa [#allocation1], 1

// kernel: tile.13
$region0: #{tile.13}
  #allocation2 [shape = 's32[1]{0}', space=sflag, size = 0x4, scoped, tag = 'scoped memory for tile.13']
  %s0 = inlined_call_operand.hbm [shape: f32[8], index: 0, kind: input, shape index: {}]
  %s1 = inlined_call_operand.vmem [shape: f32[14,8], index: 1, kind: output, shape index: {}]
  $region1: #{tile.13} parent=0
    #allocation0 [shape = 'u8[512]{0}', space=vmem, size = 0x400, scoped, tag = 'operand span for operand 0']
    #allocation1 [shape = 's32[1]{0}', space=sflag, size = 0x4, scoped, tag = 'scoped memory for tile.13']
    %2 = vsyncpa [#allocation1], 0
    // Predicated region
    $region2: #{tile.13} parent=1 // pred_check
      _
    $region3: #{tile.13} parent=1 // pred_check_branch
      %4 = sbr.rel (0) target = $region5
    $region4: #{tile.13} parent=1 // pred_region
      %s6 = ssub.s32 16, 16
      %7 = vsyncadd [#allocation1], %s6
      %s9 = sshll.u32 [#allocation0], 4
      %s10 = int_to_ptr.vmem [resolvable:$true] %s9
      %12 = dma.hbm_to_vmem [thread:$0]  %s0, 16, %s10, [#allocation1]
    $region5: #{tile.13} parent=1 // pred_fallthru
      _
    // Predicated region
    $region6: #{tile.13} parent=1 // pred_check
      _
    $region7: #{tile.13} parent=1 // pred_check_branch
      %14 = sbr.rel (0) target = $region9
    $region8: #{tile.13} parent=1 // pred_region
      %15 = dma.done [#allocation1], 16
    $region9: #{tile.13} parent=1 // pred_fallthru
      _
    %v16 = vld [vmem:[#allocation0] ss:$0 sm:$0xff]
    %17 = vst [vmem:[%s1] sm:$0xff] %v16
    %s18 = scalar_lea.vmem %s1, 8
    %19 = vst [vmem:[%s18] sm:$0xff] %v16
    %20 = vsyncpa [#allocation1], 1

// kernel: tile.19
$region0: #{tile.19}
  %s0 = inlined_call_operand.vmem [shape: f32[12,8], index: 0, kind: input, shape index: {}]
  %s1 = inlined_call_operand.vmem [shape: f32[96], index: 1, kind: output, shape index: {}]
  $region1: #{tile.19} parent=0
    #allocation0 [shape = 'u8[4096]{0}', space=vmem, size = 0x1000, scoped, tag = 'scoped mem for output reshape']
    %v2 = vld [vmem:[%s0] sm:$0x1]
    %vm3 = vcmask 64512
    %4 = vst.msk [vmem:[#allocation0] sm:$0x1] %vm3, %v2
    %s5 = scalar_lea.vmem %s0, 11
    %v6 = vld [vmem:[%s5] sm:$0x1]
    %7 = vrot.lane.b32.xlu0 %v6, 88
    %v8 = vpop.permute.xlu0 %7
    %vm9 = vcmask 786112
    %10 = vst.msk [vmem:[#allocation0] sm:$0x1] %vm9, %v8
    %s11 = scalar_lea.vmem %s0, 10
    %v12 = vld [vmem:[%s11] sm:$0x1]
    %13 = vrot.lane.b32.xlu0 %v12, 80
    %v14 = vpop.permute.xlu0 %13
    %vm15 = vcmask 720512
    %16 = vst.msk [vmem:[#allocation0] sm:$0x1] %vm15, %v14
    %s17 = scalar_lea.vmem %s0, 9
    %v18 = vld [vmem:[%s17] sm:$0x1]
    %19 = vrot.lane.b32.xlu0 %v18, 72
    %v20 = vpop.permute.xlu0 %19
    %vm21 = vcmask 654912
    %22 = vst.msk [vmem:[#allocation0] sm:$0x1] %vm21, %v20
    %s23 = scalar_lea.vmem %s0, 8
    %v24 = vld [vmem:[%s23] sm:$0x1]
    %25 = vrot.lane.b32.xlu0 %v24, 64
    %v26 = vpop.permute.xlu0 %25
    %vm27 = vcmask 589312
    %28 = vst.msk [vmem:[#allocation0] sm:$0x1] %vm27, %v26
    %s29 = scalar_lea.vmem %s0, 7
    %v30 = vld [vmem:[%s29] sm:$0x1]
    %31 = vrot.lane.b32.xlu0 %v30, 56
    %v32 = vpop.permute.xlu0 %31
    %vm33 = vcmask 523712
    %34 = vst.msk [vmem:[#allocation0] sm:$0x1] %vm33, %v32
    %s35 = scalar_lea.vmem %s0, 6
    %v36 = vld [vmem:[%s35] sm:$0x1]
    %37 = vrot.lane.b32.xlu0 %v36, 48
    %v38 = vpop.permute.xlu0 %37
    %vm39 = vcmask 458112
    %40 = vst.msk [vmem:[#allocation0] sm:$0x1] %vm39, %v38
    %s41 = scalar_lea.vmem %s0, 5
    %v42 = vld [vmem:[%s41] sm:$0x1]
    %43 = vrot.lane.b32.xlu0 %v42, 40
    %v44 = vpop.permute.xlu0 %43
    %vm45 = vcmask 392512
    %46 = vst.msk [vmem:[#allocation0] sm:$0x1] %vm45, %v44
    %s47 = scalar_lea.vmem %s0, 4
    %v48 = vld [vmem:[%s47] sm:$0x1]
    %49 = vrot.lane.b32.xlu0 %v48, 32
    %v50 = vpop.permute.xlu0 %49
    %vm51 = vcmask 326912
    %52 = vst.msk [vmem:[#allocation0] sm:$0x1] %vm51, %v50
    %s53 = scalar_lea.vmem %s0, 3
    %v54 = vld [vmem:[%s53] sm:$0x1]
    %55 = vrot.lane.b32.xlu0 %v54, 24
    %v56 = vpop.permute.xlu0 %55
    %vm57 = vcmask 261312
    %58 = vst.msk [vmem:[#allocation0] sm:$0x1] %vm57, %v56
    %s59 = scalar_lea.vmem %s0, 2
    %v60 = vld [vmem:[%s59] sm:$0x1]
    %61 = vrot.lane.b32.xlu0 %v60, 16
    %v62 = vpop.permute.xlu0 %61
    %vm63 = vcmask 195712
    %64 = vst.msk [vmem:[#allocation0] sm:$0x1] %vm63, %v62
    %s65 = scalar_lea.vmem %s0, 1
    %v66 = vld [vmem:[%s65] sm:$0x1]
    %67 = vrot.lane.b32.xlu0 %v66, 8
    %v68 = vpop.permute.xlu0 %67
    %vm69 = vcmask 130112
    %70 = vst.msk [vmem:[#allocation0] sm:$0x1] %vm69, %v68
    %s72 = sshllo.u32 0, 1
    %v74 = vld [vmem:[#allocation0] sm:%s72]
    %s75 = sshllo.u32 0, 1
    %76 = vst [vmem:[%s1] sm:%s75] %v74

// kernel: tile.14
$region0: #{tile.14}
  %s0 = inlined_call_operand.vmem [shape: f32[14,8], index: 0, kind: input, shape index: {}]
  %s1 = inlined_call_operand.vmem [shape: f32[112], index: 1, kind: output, shape index: {}]
  $region1: #{tile.14} parent=0
    #allocation0 [shape = 'u8[4096]{0}', space=vmem, size = 0x1000, scoped, tag = 'scoped mem for output reshape']
    %v2 = vld [vmem:[%s0] sm:$0x1]
    %vm3 = vcmask 64512
    %4 = vst.msk [vmem:[#allocation0] sm:$0x1] %vm3, %v2
    %s5 = scalar_lea.vmem %s0, 13
    %v6 = vld [vmem:[%s5] sm:$0x1]
    %7 = vrot.lane.b32.xlu0 %v6, 104
    %v8 = vpop.permute.xlu0 %7
    %vm9 = vcmask 917312
    %10 = vst.msk [vmem:[#allocation0] sm:$0x1] %vm9, %v8
    %s11 = scalar_lea.vmem %s0, 12
    %v12 = vld [vmem:[%s11] sm:$0x1]
    %13 = vrot.lane.b32.xlu0 %v12, 96
    %v14 = vpop.permute.xlu0 %13
    %vm15 = vcmask 851712
    %16 = vst.msk [vmem:[#allocation0] sm:$0x1] %vm15, %v14
    %s17 = scalar_lea.vmem %s0, 11
    %v18 = vld [vmem:[%s17] sm:$0x1]
    %19 = vrot.lane.b32.xlu0 %v18, 88
    %v20 = vpop.permute.xlu0 %19
    %vm21 = vcmask 786112
    %22 = vst.msk [vmem:[#allocation0] sm:$0x1] %vm21, %v20
    %s23 = scalar_lea.vmem %s0, 10
    %v24 = vld [vmem:[%s23] sm:$0x1]
    %25 = vrot.lane.b32.xlu0 %v24, 80
    %v26 = vpop.permute.xlu0 %25
    %vm27 = vcmask 720512
    %28 = vst.msk [vmem:[#allocation0] sm:$0x1] %vm27, %v26
    %s29 = scalar_lea.vmem %s0, 9
    %v30 = vld [vmem:[%s29] sm:$0x1]
    %31 = vrot.lane.b32.xlu0 %v30, 72
    %v32 = vpop.permute.xlu0 %31
    %vm33 = vcmask 654912
    %34 = vst.msk [vmem:[#allocation0] sm:$0x1] %vm33, %v32
    %s35 = scalar_lea.vmem %s0, 8
    %v36 = vld [vmem:[%s35] sm:$0x1]
    %37 = vrot.lane.b32.xlu0 %v36, 64
    %v38 = vpop.permute.xlu0 %37
    %vm39 = vcmask 589312
    %40 = vst.msk [vmem:[#allocation0] sm:$0x1] %vm39, %v38
    %s41 = scalar_lea.vmem %s0, 7
    %v42 = vld [vmem:[%s41] sm:$0x1]
    %43 = vrot.lane.b32.xlu0 %v42, 56
    %v44 = vpop.permute.xlu0 %43
    %vm45 = vcmask 523712
    %46 = vst.msk [vmem:[#allocation0] sm:$0x1] %vm45, %v44
    %s47 = scalar_lea.vmem %s0, 6
    %v48 = vld [vmem:[%s47] sm:$0x1]
    %49 = vrot.lane.b32.xlu0 %v48, 48
    %v50 = vpop.permute.xlu0 %49
    %vm51 = vcmask 458112
    %52 = vst.msk [vmem:[#allocation0] sm:$0x1] %vm51, %v50
    %s53 = scalar_lea.vmem %s0, 5
    %v54 = vld [vmem:[%s53] sm:$0x1]
    %55 = vrot.lane.b32.xlu0 %v54, 40
    %v56 = vpop.permute.xlu0 %55
    %vm57 = vcmask 392512
    %58 = vst.msk [vmem:[#allocation0] sm:$0x1] %vm57, %v56
    %s59 = scalar_lea.vmem %s0, 4
    %v60 = vld [vmem:[%s59] sm:$0x1]
    %61 = vrot.lane.b32.xlu0 %v60, 32
    %v62 = vpop.permute.xlu0 %61
    %vm63 = vcmask 326912
    %64 = vst.msk [vmem:[#allocation0] sm:$0x1] %vm63, %v62
    %s65 = scalar_lea.vmem %s0, 3
    %v66 = vld [vmem:[%s65] sm:$0x1]
    %67 = vrot.lane.b32.xlu0 %v66, 24
    %v68 = vpop.permute.xlu0 %67
    %vm69 = vcmask 261312
    %70 = vst.msk [vmem:[#allocation0] sm:$0x1] %vm69, %v68
    %s71 = scalar_lea.vmem %s0, 2
    %v72 = vld [vmem:[%s71] sm:$0x1]
    %73 = vrot.lane.b32.xlu0 %v72, 16
    %v74 = vpop.permute.xlu0 %73
    %vm75 = vcmask 195712
    %76 = vst.msk [vmem:[#allocation0] sm:$0x1] %vm75, %v74
    %s77 = scalar_lea.vmem %s0, 1
    %v78 = vld [vmem:[%s77] sm:$0x1]
    %79 = vrot.lane.b32.xlu0 %v78, 8
    %v80 = vpop.permute.xlu0 %79
    %vm81 = vcmask 130112
    %82 = vst.msk [vmem:[#allocation0] sm:$0x1] %vm81, %v80
    %s84 = sshllo.u32 0, 1
    %v86 = vld [vmem:[#allocation0] sm:%s84]
    %s87 = sshllo.u32 0, 1
    %88 = vst [vmem:[%s1] sm:%s87] %v86

// kernel: conv_x2.1
$region0: #{conv_x2.1}
  #allocation0 [shape = 'u32[]', space=smem, size = 0x4, offset = 0x4, fixed_abs, tag = 'smem constant byte address 0x4 - core index']
  #allocation1 [shape = 'u32[144,128]{1,0:T(1,128)}', space=vmem, size = 0x12000, scoped, tag = 'internal scratch']
  %s0 = inlined_call_operand.vmem [shape: bf16[2,16,64], index: 0, kind: input, shape index: {}]
  %s1 = inlined_call_operand.vmem [shape: bf16[3,64,128], index: 1, kind: input, shape index: {}]
  %s2 = inlined_call_operand.vmem [shape: f32[1,128], index: 2, kind: input, shape index: {}]
  %s3 = inlined_call_operand.vmem [shape: bf16[3,128,128], index: 3, kind: input, shape index: {}]
  %s4 = inlined_call_operand.vmem [shape: f32[1,128], index: 4, kind: input, shape index: {}]
  %s5 = inlined_call_operand.vmem [shape: f32[2,12,128], index: 5, kind: output, shape index: {}]
  %s6 = sld [smem:[#allocation0]]
  $region53: #{conv_x2.1} parent=0
    _
  %s8 = ssub.s32 1, %s6
  %s9 = scalar_select 0, %s8, %s6
  loop: start=0, step=1, limit=4
  $region2: #{conv_x2.1} parent=0 // loop_pre_header
    _
  $region3: #{conv_x2.1} parent=0 // loop_header
    %s11 = sphi 0, %s15
    %p12 = scmp.ge.s32.totalorder %s11, 4
    %s21 = sphi 0, %s23
    %s24 = sphi 0, %s21
    %s25 = sphi 0, %s24
    %s41 = sphi 0, %s25
    %s45 = sphi 0, %s45
    %s47 = sphi 0, %s45
    %s48 = sphi 0, %s47
    %s62 = sphi 0, %s48
    %s66 = sphi 0, %s66
    %s68 = sphi 0, %s66
    %s69 = sphi 0, %s68
    %s83 = sphi 0, %s69
    %s87 = sphi 0, %s87
    %s89 = sphi 0, %s87
    %s90 = sphi 0, %s89
    %s104 = sphi 0, %s90
    %s108 = sphi 0, %s108
    %s110 = sphi 0, %s108
    %s111 = sphi 0, %s110
    %s125 = sphi 0, %s111
    %s131 = sphi 0, %s133
    %s134 = sphi 0, %s131
    %s135 = sphi 0, %s134
    %s151 = sphi 0, %s135
  $region4: #{conv_x2.1} parent=0 // loop_header_branch
    %14 = sbr.rel (%p12) target = $region8
  $region5: #{conv_x2.1} parent=0 // loop_body
    %s16 = ssub.s32 %s11, 1
    %s17 = ssub.s32 %s11, 2
    %s18 = sadd.s32 %s11, 1
    %s19 = ssub.s32 %s11, %s18
    %p20 = scmp.eq.s32.totalorder %s19, 0
    %s22 = sadd.s32 %s21, 1
    %s23 = scalar_select %p20, %s21, %s22
    %p26 = pneg %p20
    %p27 = scmp.eq.s32.totalorder %s11, 1
    %p28 = por %p26, %p27
    %p29 = scmp.ne.s32.totalorder %s21, %s24
    %p30 = scmp.eq.s32.totalorder %s11, 0
    %p31 = por %p29, %p30
    %p32 = scmp.ne.s32.totalorder %s21, %s24
    %p33 = scmp.eq.s32.totalorder %s16, 1
    %p34 = por %p32, %p33
    %p35 = scmp.ne.s32.totalorder %s24, %s25
    %p36 = scmp.eq.s32.totalorder %s16, 0
    %p37 = por %p35, %p36
    %p38 = scmp.ne.s32.totalorder %s24, %s25
    %p39 = scmp.eq.s32.totalorder %s17, 1
    %p40 = por %p38, %p39
    %p42 = scmp.ne.s32.totalorder %s25, %s41
    %p43 = scmp.eq.s32.totalorder %s17, 0
    %p44 = por %p42, %p43
    %s46 = sadd.s32 %s45, 1
    %p49 = scmp.eq.s32.totalorder %s11, 1
    %p50 = scmp.ne.s32.totalorder %s45, %s47
    %p51 = scmp.eq.s32.totalorder %s11, 0
    %p52 = por %p50, %p51
    %p53 = scmp.ne.s32.totalorder %s45, %s47
    %p54 = scmp.eq.s32.totalorder %s16, 1
    %p55 = por %p53, %p54
    %p56 = scmp.ne.s32.totalorder %s47, %s48
    %p57 = scmp.eq.s32.totalorder %s16, 0
    %p58 = por %p56, %p57
    %p59 = scmp.ne.s32.totalorder %s47, %s48
    %p60 = scmp.eq.s32.totalorder %s17, 1
    %p61 = por %p59, %p60
    %p63 = scmp.ne.s32.totalorder %s48, %s62
    %p64 = scmp.eq.s32.totalorder %s17, 0
    %p65 = por %p63, %p64
    %s67 = sadd.s32 %s66, 1
    %p70 = scmp.eq.s32.totalorder %s11, 1
    %p71 = scmp.ne.s32.totalorder %s66, %s68
    %p72 = scmp.eq.s32.totalorder %s11, 0
    %p73 = por %p71, %p72
    %p74 = scmp.ne.s32.totalorder %s66, %s68
    %p75 = scmp.eq.s32.totalorder %s16, 1
    %p76 = por %p74, %p75
    %p77 = scmp.ne.s32.totalorder %s68, %s69
    %p78 = scmp.eq.s32.totalorder %s16, 0
    %p79 = por %p77, %p78
    %p80 = scmp.ne.s32.totalorder %s68, %s69
    %p81 = scmp.eq.s32.totalorder %s17, 1
    %p82 = por %p80, %p81
    %p84 = scmp.ne.s32.totalorder %s69, %s83
    %p85 = scmp.eq.s32.totalorder %s17, 0
    %p86 = por %p84, %p85
    %s88 = sadd.s32 %s87, 1
    %p91 = scmp.eq.s32.totalorder %s11, 1
    %p92 = scmp.ne.s32.totalorder %s87, %s89
    %p93 = scmp.eq.s32.totalorder %s11, 0
    %p94 = por %p92, %p93
    %p95 = scmp.ne.s32.totalorder %s87, %s89
    %p96 = scmp.eq.s32.totalorder %s16, 1
    %p97 = por %p95, %p96
    %p98 = scmp.ne.s32.totalorder %s89, %s90
    %p99 = scmp.eq.s32.totalorder %s16, 0
    %p100 = por %p98, %p99
    %p101 = scmp.ne.s32.totalorder %s89, %s90
    %p102 = scmp.eq.s32.totalorder %s17, 1
    %p103 = por %p101, %p102
    %p105 = scmp.ne.s32.totalorder %s90, %s104
    %p106 = scmp.eq.s32.totalorder %s17, 0
    %p107 = por %p105, %p106
    %s109 = sadd.s32 %s108, 1
    %p112 = scmp.eq.s32.totalorder %s11, 1
    %p113 = scmp.ne.s32.totalorder %s108, %s110
    %p114 = scmp.eq.s32.totalorder %s11, 0
    %p115 = por %p113, %p114
    %p116 = scmp.ne.s32.totalorder %s108, %s110
    %p117 = scmp.eq.s32.totalorder %s16, 1
    %p118 = por %p116, %p117
    %p119 = scmp.ne.s32.totalorder %s110, %s111
    %p120 = scmp.eq.s32.totalorder %s16, 0
    %p121 = por %p119, %p120
    %p122 = scmp.ne.s32.totalorder %s110, %s111
    %p123 = scmp.eq.s32.totalorder %s17, 1
    %p124 = por %p122, %p123
    %p126 = scmp.ne.s32.totalorder %s111, %s125
    %p127 = scmp.eq.s32.totalorder %s17, 0
    %p128 = por %p126, %p127
    %s129 = ssub.s32 %s11, %s18
    %p130 = scmp.eq.s32.totalorder %s129, 0
    %s132 = sadd.s32 %s131, 1
    %s133 = scalar_select %p130, %s131, %s132
    %p136 = pneg %p130
    %p137 = scmp.eq.s32.totalorder %s11, 1
    %p138 = por %p136, %p137
    %p139 = scmp.ne.s32.totalorder %s131, %s134
    %p140 = scmp.eq.s32.totalorder %s11, 0
    %p141 = por %p139, %p140
    %p142 = scmp.ne.s32.totalorder %s131, %s134
    %p143 = scmp.eq.s32.totalorder %s16, 1
    %p144 = por %p142, %p143
    %p145 = scmp.ne.s32.totalorder %s134, %s135
    %p146 = scmp.eq.s32.totalorder %s16, 0
    %p147 = por %p145, %p146
    %p148 = scmp.ne.s32.totalorder %s134, %s135
    %p149 = scmp.eq.s32.totalorder %s17, 1
    %p150 = por %p148, %p149
    %p152 = scmp.ne.s32.totalorder %s135, %s151
    %p153 = scmp.eq.s32.totalorder %s17, 0
    %p154 = por %p152, %p153
    %p155 = scmp.le.s32.totalorder 1, %s11
    %p156 = scmp.lt.s32.totalorder %s11, 3
    %p157 = pnand %p155, %p156
    %p158 = pneg %p157
    // Predicated region
    $region9: #{conv_x2.1} parent=5 // pred_check
      _
    $region10: #{conv_x2.1} parent=5 // pred_check_branch
      %160 = sbr.rel (%p157) target = $region12
    $region11: #{conv_x2.1} parent=5 // pred_region
      %s161 = ssub.s32 %s11, 1
      // Predicated region
      $region13: #{conv_x2.1} parent=11 // pred_check
        %p162 = pneg %p58
      $region14: #{conv_x2.1} parent=11 // pred_check_branch
        %164 = sbr.rel (%p162) target = $region16
      $region15: #{conv_x2.1} parent=11 // pred_region
        _
      $region16: #{conv_x2.1} parent=11 // pred_fallthru
        _
      // Predicated region
      $region17: #{conv_x2.1} parent=11 // pred_check
        %p165 = pneg %p79
      $region18: #{conv_x2.1} parent=11 // pred_check_branch
        %167 = sbr.rel (%p165) target = $region20
      $region19: #{conv_x2.1} parent=11 // pred_region
        _
      $region20: #{conv_x2.1} parent=11 // pred_fallthru
        _
      // Predicated region
      $region21: #{conv_x2.1} parent=11 // pred_check
        %p168 = pneg %p100
      $region22: #{conv_x2.1} parent=11 // pred_check_branch
        %170 = sbr.rel (%p168) target = $region24
      $region23: #{conv_x2.1} parent=11 // pred_region
        _
      $region24: #{conv_x2.1} parent=11 // pred_fallthru
        _
      // Predicated region
      $region25: #{conv_x2.1} parent=11 // pred_check
        %p171 = pneg %p121
      $region26: #{conv_x2.1} parent=11 // pred_check_branch
        %173 = sbr.rel (%p171) target = $region28
      $region27: #{conv_x2.1} parent=11 // pred_region
        _
      $region28: #{conv_x2.1} parent=11 // pred_fallthru
        _
    $region12: #{conv_x2.1} parent=5 // pred_fallthru
      _
    %p174 = scmp.lt.s32.totalorder %s11, 2
    // Predicated region
    $region29: #{conv_x2.1} parent=5 // pred_check
      %p175 = pneg %p174
    $region30: #{conv_x2.1} parent=5 // pred_check_branch
      %177 = sbr.rel (%p175) target = $region32
    $region31: #{conv_x2.1} parent=5 // pred_region
      // Predicated region
      $region33: #{conv_x2.1} parent=31 // pred_check
        %p178 = pneg %p31
      $region34: #{conv_x2.1} parent=31 // pred_check_branch
        %180 = sbr.rel (%p178) target = $region36
      $region35: #{conv_x2.1} parent=31 // pred_region
        %p181 = scmp.lt.s32.totalorder %s11, 1
        %s182 = scalar_select %p181, %s11, 1
        %s183 = smul.addr %s182, 2
        %s184 = smul.addr %s183, 4
        %s185 = scalar_lea.vmem %s0, %s184
      $region36: #{conv_x2.1} parent=31 // pred_fallthru
        _
    $region32: #{conv_x2.1} parent=5 // pred_fallthru
      _
    %p186 = scmp.le.s32.totalorder 1, %s11
    %p187 = scmp.lt.s32.totalorder %s11, 3
    %p188 = pnand %p186, %p187
    %p189 = pneg %p188
    // Predicated region
    $region37: #{conv_x2.1} parent=5 // pred_check
      _
    $region38: #{conv_x2.1} parent=5 // pred_check_branch
      %191 = sbr.rel (%p188) target = $region40
    $region39: #{conv_x2.1} parent=5 // pred_region
      %s192 = ssub.s32 %s11, 1
      %p193 = scmp.lt.s32.totalorder %s16, 1
      %s194 = scalar_select %p193, %s16, 1
      %s195 = smul.addr %s194, 2
      %s196 = smul.addr %s195, 4
      %s197 = scalar_lea.vmem %s0, %s196
      %p198 = pneg %p37
      %p199 = pneg %p34
      %p200 = pneg %p58
      %p201 = pneg %p55
      %p202 = pneg %p79
      %p203 = pneg %p76
      %p204 = pneg %p100
      %p205 = pneg %p97
      %p206 = pneg %p121
      %p207 = pneg %p118
      %p208 = pneg %p147
      %p209 = pneg %p144
      %p210 = scmp.lt.s32.totalorder %s16, 1
      %s211 = scalar_select %p210, %s16, 1
      %s212 = smul.addr %s211, 2
      %s213 = smul.addr %s212, 8
      %s214 = scalar_lea.vmem %s5, %s213
      %p215 = scmp.lt.s32.totalorder %s16, 1
      %s216 = scalar_select %p215, %s16, 1
      %s217 = smul.addr %s216, 2
      %s218 = smul.addr %s217, 4
      %s219 = scalar_lea.vmem %s0, %s218
      %p220 = scmp.lt.s32.totalorder %s16, 1
      %s221 = scalar_select %p220, %s16, 1
      %s222 = smul.addr %s221, 2
      %s223 = smul.addr %s222, 8
      %s224 = scalar_lea.vmem %s5, %s223
      %v226 = vld [vmem:[%s219] sm:$0xf]
      %v227 = vld [vmem:[%s219 + $0x4] sm:$0xf]
      %v228 = vld [vmem:[%s1] sm:$0xf]
      %v229 = vld [vmem:[%s1 + $0x4] sm:$0xf]
      %v230 = vld [vmem:[%s1 + $0x8] sm:$0xf]
      %v231 = vld [vmem:[%s1 + $0xc] sm:$0xf]
      %v232 = vld [vmem:[%s1 + $0x10] sm:$0xf]
      %v233 = vld [vmem:[%s1 + $0x14] sm:$0xf]
      %v234 = vld [vmem:[%s1 + $0x18] sm:$0xf]
      %v235 = vld [vmem:[%s1 + $0x1c] sm:$0xf]
      %v238 = vunpack.c.l.b16 %v226
      %v239 = vunpack.c.l.b16 %v227
      %v240 = vpack.c.b16 %v239, %v238
      %v249 = vunpack.c.l.b16 %v228
      %v250 = vunpack.c.l.b16 %v229
      %v251 = vunpack.c.l.b16 %v230
      %v252 = vunpack.c.l.b16 %v231
      %v253 = vunpack.c.l.b16 %v232
      %v254 = vunpack.c.l.b16 %v233
      %v255 = vunpack.c.l.b16 %v234
      %v256 = vunpack.c.l.b16 %v235
      %v257 = vpack.c.b16 %v250, %v249
      %v258 = vpack.c.b16 %v252, %v251
      %v259 = vpack.c.b16 %v254, %v253
      %v260 = vpack.c.b16 %v256, %v255
      %vm265 = vcmask 523264
      %v267 = vsel %vm265, %v240, 0
      %269 = vmatprep.subr.bf16.mxu0 0
      %270 = vmatpush1.bf16.msra.mxu0 %v257
      %271 = vmatprep.subr.bf16.mxu0 0
      %272 = vmatpush1.bf16.msra.mxu0 %v258
      %273 = vmatprep.subr.bf16.mxu0 0
      %274 = vmatpush1.bf16.msra.mxu0 %v259
      %275 = vmatprep.subr.bf16.mxu0 0
      %276 = vmatpush1.bf16.msra.mxu0 %v260
      %277 = vmatprep.subr.bf16.mxu0 0
      %278 = vmatpush1.bf16.msra.mxu0 0
      %279 = vmatprep.subr.bf16.mxu0 0
      %280 = vmatpush1.bf16.msra.mxu0 0
      %281 = vmatprep.subr.bf16.mxu0 0
      %282 = vmatpush1.bf16.msra.mxu0 0
      %283 = vmatprep.subr.bf16.mxu0 0
      %284 = vmatpush1.bf16.msra.mxu0 0
      %285 = vmatprep.subr.bf16.mxu0 0
      %286 = vmatpush1.bf16.msra.mxu0 0
      %287 = vmatprep.subr.bf16.mxu0 0
      %288 = vmatpush1.bf16.msra.mxu0 0
      %289 = vmatprep.subr.bf16.mxu0 0
      %290 = vmatpush1.bf16.msra.mxu0 0
      %291 = vmatprep.subr.bf16.mxu0 0
      %292 = vmatpush1.bf16.msra.mxu0 0
      %293 = vmatprep.subr.bf16.mxu0 0
      %294 = vmatpush1.bf16.msra.mxu0 0
      %295 = vmatprep.subr.bf16.mxu0 0
      %296 = vmatpush1.bf16.msra.mxu0 0
      %297 = vmatprep.subr.bf16.mxu0 0
      %298 = vmatpush1.bf16.msra.mxu0 0
      %299 = vmatprep.subr.bf16.mxu0 0
      %300 = vmatpush1.bf16.msra.mxu0 0
      %301 = vmatprep.mubr.bf16.mxu0 0
      %302 = vmatmul.mubr.bf16.gmra.mrb[0].mxu0 %v267
      %v303 = vpop.f32.mrb[0].mxu0
      %v304 = vadd.f32 0.0, %v303
      %v305 = vpop.f32.mrb[0].mxu0
      %v306 = vpop.f32.mrb[0].mxu0
      %v307 = vadd.f32 0.0, %v306
      %v308 = vpop.f32.mrb[0].mxu0
      %309 = vdwg.mxu0
      %s310 = scalar_lea.vmem %s1, 32
      %v311 = vld [vmem:[%s310] sm:$0xf]
      %v312 = vld [vmem:[%s310 + $0x4] sm:$0xf]
      %v313 = vld [vmem:[%s310 + $0x8] sm:$0xf]
      %v314 = vld [vmem:[%s310 + $0xc] sm:$0xf]
      %v315 = vld [vmem:[%s310 + $0x10] sm:$0xf]
      %v316 = vld [vmem:[%s310 + $0x14] sm:$0xf]
      %v317 = vld [vmem:[%s310 + $0x18] sm:$0xf]
      %v318 = vld [vmem:[%s310 + $0x1c] sm:$0xf]
      %v327 = vunpack.c.l.b16 %v311
      %v328 = vunpack.c.l.b16 %v312
      %v329 = vunpack.c.l.b16 %v313
      %v330 = vunpack.c.l.b16 %v314
      %v331 = vunpack.c.l.b16 %v315
      %v332 = vunpack.c.l.b16 %v316
      %v333 = vunpack.c.l.b16 %v317
      %v334 = vunpack.c.l.b16 %v318
      %v335 = vpack.c.b16 %v328, %v327
      %v336 = vpack.c.b16 %v330, %v329
      %v337 = vpack.c.b16 %v332, %v331
      %v338 = vpack.c.b16 %v334, %v333
      %343 = vmatprep.subr.bf16.mxu0 0
      %344 = vmatpush1.bf16.msra.mxu0 %v335
      %345 = vmatprep.subr.bf16.mxu0 0
      %346 = vmatpush1.bf16.msra.mxu0 %v336
      %347 = vmatprep.subr.bf16.mxu0 0
      %348 = vmatpush1.bf16.msra.mxu0 %v337
      %349 = vmatprep.subr.bf16.mxu0 0
      %350 = vmatpush1.bf16.msra.mxu0 %v338
      %351 = vmatprep.subr.bf16.mxu0 0
      %352 = vmatpush1.bf16.msra.mxu0 0
      %353 = vmatprep.subr.bf16.mxu0 0
      %354 = vmatpush1.bf16.msra.mxu0 0
      %355 = vmatprep.subr.bf16.mxu0 0
      %356 = vmatpush1.bf16.msra.mxu0 0
      %357 = vmatprep.subr.bf16.mxu0 0
      %358 = vmatpush1.bf16.msra.mxu0 0
      %359 = vmatprep.subr.bf16.mxu0 0
      %360 = vmatpush1.bf16.msra.mxu0 0
      %361 = vmatprep.subr.bf16.mxu0 0
      %362 = vmatpush1.bf16.msra.mxu0 0
      %363 = vmatprep.subr.bf16.mxu0 0
      %364 = vmatpush1.bf16.msra.mxu0 0
      %365 = vmatprep.subr.bf16.mxu0 0
      %366 = vmatpush1.bf16.msra.mxu0 0
      %367 = vmatprep.subr.bf16.mxu0 0
      %368 = vmatpush1.bf16.msra.mxu0 0
      %369 = vmatprep.subr.bf16.mxu0 0
      %370 = vmatpush1.bf16.msra.mxu0 0
      %371 = vmatprep.subr.bf16.mxu0 0
      %372 = vmatpush1.bf16.msra.mxu0 0
      %373 = vmatprep.subr.bf16.mxu0 0
      %374 = vmatpush1.bf16.msra.mxu0 0
      %375 = vmatprep.mubr.bf16.mxu0 0
      %376 = vmatmul.mubr.bf16.gmra.mrb[0].mxu0 %v267
      %v377 = vpop.f32.mrb[0].mxu0
      %v378 = vadd.f32 0.0, %v377
      %v379 = vpop.f32.mrb[0].mxu0
      %v380 = vpop.f32.mrb[0].mxu0
      %v381 = vadd.f32 0.0, %v380
      %v382 = vpop.f32.mrb[0].mxu0
      %383 = vdwg.mxu0
      %vm386 = vcmask 1046528
      %v387 = vrot.slane %v378, 1
      %v388 = vrot.slane %v381, 1
      %v389 = vsel %vm386, %v387, %v388
      %v392 = vadd.f32 %v304, %v389
      %v393 = vadd.f32 %v307, %v388
      %s394 = scalar_lea.vmem %s1, 64
      %v395 = vld [vmem:[%s394] sm:$0xf]
      %v396 = vld [vmem:[%s394 + $0x4] sm:$0xf]
      %v397 = vld [vmem:[%s394 + $0x8] sm:$0xf]
      %v398 = vld [vmem:[%s394 + $0xc] sm:$0xf]
      %v399 = vld [vmem:[%s394 + $0x10] sm:$0xf]
      %v400 = vld [vmem:[%s394 + $0x14] sm:$0xf]
      %v401 = vld [vmem:[%s394 + $0x18] sm:$0xf]
      %v402 = vld [vmem:[%s394 + $0x1c] sm:$0xf]
      %v411 = vunpack.c.l.b16 %v395
      %v412 = vunpack.c.l.b16 %v396
      %v413 = vunpack.c.l.b16 %v397
      %v414 = vunpack.c.l.b16 %v398
      %v415 = vunpack.c.l.b16 %v399
      %v416 = vunpack.c.l.b16 %v400
      %v417 = vunpack.c.l.b16 %v401
      %v418 = vunpack.c.l.b16 %v402
      %v419 = vpack.c.b16 %v412, %v411
      %v420 = vpack.c.b16 %v414, %v413
      %v421 = vpack.c.b16 %v416, %v415
      %v422 = vpack.c.b16 %v418, %v417
      %427 = vmatprep.subr.bf16.mxu0 0
      %428 = vmatpush1.bf16.msra.mxu0 %v419
      %429 = vmatprep.subr.bf16.mxu0 0
      %430 = vmatpush1.bf16.msra.mxu0 %v420
      %431 = vmatprep.subr.bf16.mxu0 0
      %432 = vmatpush1.bf16.msra.mxu0 %v421
      %433 = vmatprep.subr.bf16.mxu0 0
      %434 = vmatpush1.bf16.msra.mxu0 %v422
      %435 = vmatprep.subr.bf16.mxu0 0
      %436 = vmatpush1.bf16.msra.mxu0 0
      %437 = vmatprep.subr.bf16.mxu0 0
      %438 = vmatpush1.bf16.msra.mxu0 0
      %439 = vmatprep.subr.bf16.mxu0 0
      %440 = vmatpush1.bf16.msra.mxu0 0
      %441 = vmatprep.subr.bf16.mxu0 0
      %442 = vmatpush1.bf16.msra.mxu0 0
      %443 = vmatprep.subr.bf16.mxu0 0
      %444 = vmatpush1.bf16.msra.mxu0 0
      %445 = vmatprep.subr.bf16.mxu0 0
      %446 = vmatpush1.bf16.msra.mxu0 0
      %447 = vmatprep.subr.bf16.mxu0 0
      %448 = vmatpush1.bf16.msra.mxu0 0
      %449 = vmatprep.subr.bf16.mxu0 0
      %450 = vmatpush1.bf16.msra.mxu0 0
      %451 = vmatprep.subr.bf16.mxu0 0
      %452 = vmatpush1.bf16.msra.mxu0 0
      %453 = vmatprep.subr.bf16.mxu0 0
      %454 = vmatpush1.bf16.msra.mxu0 0
      %455 = vmatprep.subr.bf16.mxu0 0
      %456 = vmatpush1.bf16.msra.mxu0 0
      %457 = vmatprep.subr.bf16.mxu0 0
      %458 = vmatpush1.bf16.msra.mxu0 0
      %459 = vmatprep.mubr.bf16.mxu0 0
      %460 = vmatmul.mubr.bf16.gmra.mrb[0].mxu0 %v267
      %v461 = vpop.f32.mrb[0].mxu0
      %v462 = vadd.f32 0.0, %v461
      %v463 = vpop.f32.mrb[0].mxu0
      %v464 = vpop.f32.mrb[0].mxu0
      %v465 = vadd.f32 0.0, %v464
      %v466 = vpop.f32.mrb[0].mxu0
      %467 = vdwg.mxu0
      %vm470 = vcmask 1045504
      %v471 = vrot.slane %v462, 2
      %v472 = vrot.slane %v465, 2
      %v473 = vsel %vm470, %v471, %v472
      %v476 = vadd.f32 %v392, %v473
      %v477 = vadd.f32 %v393, %v472
      %v478 = vld [vmem:[%s2] sm:$0x1]
      %v480 = vlaneseq
      %v481 = vshrl.u32 %v480, 7
      %v482 = vsub.s32 0, %v481
      %v483 = vrot.slane %v478, %v482
      %v485 = vadd.f32 %v476, %v483
      %v486 = vadd.f32 %v477, %v483
      %v487 = vmax.f32 %v485, 0.0
      %v488 = vmax.f32 %v486, 0.0
      %v489 = vpack.c.bf16 %v488, %v487
      %v490 = vld [vmem:[%s3] sm:$0xf]
      %v491 = vld [vmem:[%s3 + $0x4] sm:$0xf]
      %v492 = vld [vmem:[%s3 + $0x8] sm:$0xf]
      %v493 = vld [vmem:[%s3 + $0xc] sm:$0xf]
      %v494 = vld [vmem:[%s3 + $0x10] sm:$0xf]
      %v495 = vld [vmem:[%s3 + $0x14] sm:$0xf]
      %v496 = vld [vmem:[%s3 + $0x18] sm:$0xf]
      %v497 = vld [vmem:[%s3 + $0x1c] sm:$0xf]
      %v498 = vld [vmem:[%s3 + $0x20] sm:$0xf]
      %v499 = vld [vmem:[%s3 + $0x24] sm:$0xf]
      %v500 = vld [vmem:[%s3 + $0x28] sm:$0xf]
      %v501 = vld [vmem:[%s3 + $0x2c] sm:$0xf]
      %v502 = vld [vmem:[%s3 + $0x30] sm:$0xf]
      %v503 = vld [vmem:[%s3 + $0x34] sm:$0xf]
      %v504 = vld [vmem:[%s3 + $0x38] sm:$0xf]
      %v505 = vld [vmem:[%s3 + $0x3c] sm:$0xf]
      %v522 = vunpack.c.l.b16 %v490
      %v523 = vunpack.c.l.b16 %v491
      %v524 = vunpack.c.l.b16 %v492
      %v525 = vunpack.c.l.b16 %v493
      %v526 = vunpack.c.l.b16 %v494
      %v527 = vunpack.c.l.b16 %v495
      %v528 = vunpack.c.l.b16 %v496
      %v529 = vunpack.c.l.b16 %v497
      %v530 = vunpack.c.l.b16 %v498
      %v531 = vunpack.c.l.b16 %v499
      %v532 = vunpack.c.l.b16 %v500
      %v533 = vunpack.c.l.b16 %v501
      %v534 = vunpack.c.l.b16 %v502
      %v535 = vunpack.c.l.b16 %v503
      %v536 = vunpack.c.l.b16 %v504
      %v537 = vunpack.c.l.b16 %v505
      %v538 = vpack.c.b16 %v523, %v522
      %v539 = vpack.c.b16 %v525, %v524
      %v540 = vpack.c.b16 %v527, %v526
      %v541 = vpack.c.b16 %v529, %v528
      %v542 = vpack.c.b16 %v531, %v530
      %v543 = vpack.c.b16 %v533, %v532
      %v544 = vpack.c.b16 %v535, %v534
      %v545 = vpack.c.b16 %v537, %v536
      %554 = vmatprep.subr.bf16.mxu0 0
      %555 = vmatpush1.bf16.msra.mxu0 %v538
      %556 = vmatprep.subr.bf16.mxu0 0
      %557 = vmatpush1.bf16.msra.mxu0 %v539
      %558 = vmatprep.subr.bf16.mxu0 0
      %559 = vmatpush1.bf16.msra.mxu0 %v540
      %560 = vmatprep.subr.bf16.mxu0 0
      %561 = vmatpush1.bf16.msra.mxu0 %v541
      %562 = vmatprep.subr.bf16.mxu0 0
      %563 = vmatpush1.bf16.msra.mxu0 %v542
      %564 = vmatprep.subr.bf16.mxu0 0
      %565 = vmatpush1.bf16.msra.mxu0 %v543
      %566 = vmatprep.subr.bf16.mxu0 0
      %567 = vmatpush1.bf16.msra.mxu0 %v544
      %568 = vmatprep.subr.bf16.mxu0 0
      %569 = vmatpush1.bf16.msra.mxu0 %v545
      %570 = vmatprep.subr.bf16.mxu0 0
      %571 = vmatpush1.bf16.msra.mxu0 0
      %572 = vmatprep.subr.bf16.mxu0 0
      %573 = vmatpush1.bf16.msra.mxu0 0
      %574 = vmatprep.subr.bf16.mxu0 0
      %575 = vmatpush1.bf16.msra.mxu0 0
      %576 = vmatprep.subr.bf16.mxu0 0
      %577 = vmatpush1.bf16.msra.mxu0 0
      %578 = vmatprep.subr.bf16.mxu0 0
      %579 = vmatpush1.bf16.msra.mxu0 0
      %580 = vmatprep.subr.bf16.mxu0 0
      %581 = vmatpush1.bf16.msra.mxu0 0
      %582 = vmatprep.subr.bf16.mxu0 0
      %583 = vmatpush1.bf16.msra.mxu0 0
      %584 = vmatprep.subr.bf16.mxu0 0
      %585 = vmatpush1.bf16.msra.mxu0 0
      %586 = vmatprep.mubr.bf16.mxu0 0
      %587 = vmatmul.mubr.bf16.gmra.mrb[0].mxu0 %v489
      %v588 = vpop.f32.mrb[0].mxu0
      %v589 = vadd.f32 0.0, %v588
      %v590 = vpop.f32.mrb[0].mxu0
      %v591 = vpop.f32.mrb[0].mxu0
      %v592 = vadd.f32 0.0, %v591
      %v593 = vpop.f32.mrb[0].mxu0
      %594 = vdwg.mxu0
      %s595 = scalar_lea.vmem %s3, 64
      %v596 = vld [vmem:[%s595] sm:$0xf]
      %v597 = vld [vmem:[%s595 + $0x4] sm:$0xf]
      %v598 = vld [vmem:[%s595 + $0x8] sm:$0xf]
      %v599 = vld [vmem:[%s595 + $0xc] sm:$0xf]
      %v600 = vld [vmem:[%s595 + $0x10] sm:$0xf]
      %v601 = vld [vmem:[%s595 + $0x14] sm:$0xf]
      %v602 = vld [vmem:[%s595 + $0x18] sm:$0xf]
      %v603 = vld [vmem:[%s595 + $0x1c] sm:$0xf]
      %v604 = vld [vmem:[%s595 + $0x20] sm:$0xf]
      %v605 = vld [vmem:[%s595 + $0x24] sm:$0xf]
      %v606 = vld [vmem:[%s595 + $0x28] sm:$0xf]
      %v607 = vld [vmem:[%s595 + $0x2c] sm:$0xf]
      %v608 = vld [vmem:[%s595 + $0x30] sm:$0xf]
      %v609 = vld [vmem:[%s595 + $0x34] sm:$0xf]
      %v610 = vld [vmem:[%s595 + $0x38] sm:$0xf]
      %v611 = vld [vmem:[%s595 + $0x3c] sm:$0xf]
      %v628 = vunpack.c.l.b16 %v596
      %v629 = vunpack.c.l.b16 %v597
      %v630 = vunpack.c.l.b16 %v598
      %v631 = vunpack.c.l.b16 %v599
      %v632 = vunpack.c.l.b16 %v600
      %v633 = vunpack.c.l.b16 %v601
      %v634 = vunpack.c.l.b16 %v602
      %v635 = vunpack.c.l.b16 %v603
      %v636 = vunpack.c.l.b16 %v604
      %v637 = vunpack.c.l.b16 %v605
      %v638 = vunpack.c.l.b16 %v606
      %v639 = vunpack.c.l.b16 %v607
      %v640 = vunpack.c.l.b16 %v608
      %v641 = vunpack.c.l.b16 %v609
      %v642 = vunpack.c.l.b16 %v610
      %v643 = vunpack.c.l.b16 %v611
      %v644 = vpack.c.b16 %v629, %v628
      %v645 = vpack.c.b16 %v631, %v630
      %v646 = vpack.c.b16 %v633, %v632
      %v647 = vpack.c.b16 %v635, %v634
      %v648 = vpack.c.b16 %v637, %v636
      %v649 = vpack.c.b16 %v639, %v638
      %v650 = vpack.c.b16 %v641, %v640
      %v651 = vpack.c.b16 %v643, %v642
      %660 = vmatprep.subr.bf16.mxu0 0
      %661 = vmatpush1.bf16.msra.mxu0 %v644
      %662 = vmatprep.subr.bf16.mxu0 0
      %663 = vmatpush1.bf16.msra.mxu0 %v645
      %664 = vmatprep.subr.bf16.mxu0 0
      %665 = vmatpush1.bf16.msra.mxu0 %v646
      %666 = vmatprep.subr.bf16.mxu0 0
      %667 = vmatpush1.bf16.msra.mxu0 %v647
      %668 = vmatprep.subr.bf16.mxu0 0
      %669 = vmatpush1.bf16.msra.mxu0 %v648
      %670 = vmatprep.subr.bf16.mxu0 0
      %671 = vmatpush1.bf16.msra.mxu0 %v649
      %672 = vmatprep.subr.bf16.mxu0 0
      %673 = vmatpush1.bf16.msra.mxu0 %v650
      %674 = vmatprep.subr.bf16.mxu0 0
      %675 = vmatpush1.bf16.msra.mxu0 %v651
      %676 = vmatprep.subr.bf16.mxu0 0
      %677 = vmatpush1.bf16.msra.mxu0 0
      %678 = vmatprep.subr.bf16.mxu0 0
      %679 = vmatpush1.bf16.msra.mxu0 0
      %680 = vmatprep.subr.bf16.mxu0 0
      %681 = vmatpush1.bf16.msra.mxu0 0
      %682 = vmatprep.subr.bf16.mxu0 0
      %683 = vmatpush1.bf16.msra.mxu0 0
      %684 = vmatprep.subr.bf16.mxu0 0
      %685 = vmatpush1.bf16.msra.mxu0 0
      %686 = vmatprep.subr.bf16.mxu0 0
      %687 = vmatpush1.bf16.msra.mxu0 0
      %688 = vmatprep.subr.bf16.mxu0 0
      %689 = vmatpush1.bf16.msra.mxu0 0
      %690 = vmatprep.subr.bf16.mxu0 0
      %691 = vmatpush1.bf16.msra.mxu0 0
      %692 = vmatprep.mubr.bf16.mxu0 0
      %693 = vmatmul.mubr.bf16.gmra.mrb[0].mxu0 %v489
      %v694 = vpop.f32.mrb[0].mxu0
      %v695 = vadd.f32 0.0, %v694
      %v696 = vpop.f32.mrb[0].mxu0
      %v697 = vpop.f32.mrb[0].mxu0
      %v698 = vadd.f32 0.0, %v697
      %v699 = vpop.f32.mrb[0].mxu0
      %700 = vdwg.mxu0
      %v703 = vrot.slane %v695, 1
      %v704 = vrot.slane %v698, 1
      %v705 = vsel %vm386, %v703, %v704
      %v708 = vadd.f32 %v589, %v705
      %v709 = vadd.f32 %v592, %v704
      %s710 = scalar_lea.vmem %s3, 128
      %v711 = vld [vmem:[%s710] sm:$0xf]
      %v712 = vld [vmem:[%s710 + $0x4] sm:$0xf]
      %v713 = vld [vmem:[%s710 + $0x8] sm:$0xf]
      %v714 = vld [vmem:[%s710 + $0xc] sm:$0xf]
      %v715 = vld [vmem:[%s710 + $0x10] sm:$0xf]
      %v716 = vld [vmem:[%s710 + $0x14] sm:$0xf]
      %v717 = vld [vmem:[%s710 + $0x18] sm:$0xf]
      %v718 = vld [vmem:[%s710 + $0x1c] sm:$0xf]
      %v719 = vld [vmem:[%s710 + $0x20] sm:$0xf]
      %v720 = vld [vmem:[%s710 + $0x24] sm:$0xf]
      %v721 = vld [vmem:[%s710 + $0x28] sm:$0xf]
      %v722 = vld [vmem:[%s710 + $0x2c] sm:$0xf]
      %v723 = vld [vmem:[%s710 + $0x30] sm:$0xf]
      %v724 = vld [vmem:[%s710 + $0x34] sm:$0xf]
      %v725 = vld [vmem:[%s710 + $0x38] sm:$0xf]
      %v726 = vld [vmem:[%s710 + $0x3c] sm:$0xf]
      %v743 = vunpack.c.l.b16 %v711
      %v744 = vunpack.c.l.b16 %v712
      %v745 = vunpack.c.l.b16 %v713
      %v746 = vunpack.c.l.b16 %v714
      %v747 = vunpack.c.l.b16 %v715
      %v748 = vunpack.c.l.b16 %v716
      %v749 = vunpack.c.l.b16 %v717
      %v750 = vunpack.c.l.b16 %v718
      %v751 = vunpack.c.l.b16 %v719
      %v752 = vunpack.c.l.b16 %v720
      %v753 = vunpack.c.l.b16 %v721
      %v754 = vunpack.c.l.b16 %v722
      %v755 = vunpack.c.l.b16 %v723
      %v756 = vunpack.c.l.b16 %v724
      %v757 = vunpack.c.l.b16 %v725
      %v758 = vunpack.c.l.b16 %v726
      %v759 = vpack.c.b16 %v744, %v743
      %v760 = vpack.c.b16 %v746, %v745
      %v761 = vpack.c.b16 %v748, %v747
      %v762 = vpack.c.b16 %v750, %v749
      %v763 = vpack.c.b16 %v752, %v751
      %v764 = vpack.c.b16 %v754, %v753
      %v765 = vpack.c.b16 %v756, %v755
      %v766 = vpack.c.b16 %v758, %v757
      %775 = vmatprep.subr.bf16.mxu0 0
      %776 = vmatpush1.bf16.msra.mxu0 %v759
      %777 = vmatprep.subr.bf16.mxu0 0
      %778 = vmatpush1.bf16.msra.mxu0 %v760
      %779 = vmatprep.subr.bf16.mxu0 0
      %780 = vmatpush1.bf16.msra.mxu0 %v761
      %781 = vmatprep.subr.bf16.mxu0 0
      %782 = vmatpush1.bf16.msra.mxu0 %v762
      %783 = vmatprep.subr.bf16.mxu0 0
      %784 = vmatpush1.bf16.msra.mxu0 %v763
      %785 = vmatprep.subr.bf16.mxu0 0
      %786 = vmatpush1.bf16.msra.mxu0 %v764
      %787 = vmatprep.subr.bf16.mxu0 0
      %788 = vmatpush1.bf16.msra.mxu0 %v765
      %789 = vmatprep.subr.bf16.mxu0 0
      %790 = vmatpush1.bf16.msra.mxu0 %v766
      %791 = vmatprep.subr.bf16.mxu0 0
      %792 = vmatpush1.bf16.msra.mxu0 0
      %793 = vmatprep.subr.bf16.mxu0 0
      %794 = vmatpush1.bf16.msra.mxu0 0
      %795 = vmatprep.subr.bf16.mxu0 0
      %796 = vmatpush1.bf16.msra.mxu0 0
      %797 = vmatprep.subr.bf16.mxu0 0
      %798 = vmatpush1.bf16.msra.mxu0 0
      %799 = vmatprep.subr.bf16.mxu0 0
      %800 = vmatpush1.bf16.msra.mxu0 0
      %801 = vmatprep.subr.bf16.mxu0 0
      %802 = vmatpush1.bf16.msra.mxu0 0
      %803 = vmatprep.subr.bf16.mxu0 0
      %804 = vmatpush1.bf16.msra.mxu0 0
      %805 = vmatprep.subr.bf16.mxu0 0
      %806 = vmatpush1.bf16.msra.mxu0 0
      %807 = vmatprep.mubr.bf16.mxu0 0
      %808 = vmatmul.mubr.bf16.gmra.mrb[0].mxu0 %v489
      %v809 = vpop.f32.mrb[0].mxu0
      %v810 = vadd.f32 0.0, %v809
      %v811 = vpop.f32.mrb[0].mxu0
      %v812 = vpop.f32.mrb[0].mxu0
      %v813 = vadd.f32 0.0, %v812
      %v814 = vpop.f32.mrb[0].mxu0
      %815 = vdwg.mxu0
      %v818 = vrot.slane %v810, 2
      %v819 = vrot.slane %v813, 2
      %v820 = vsel %vm470, %v818, %v819
      %v823 = vadd.f32 %v708, %v820
      %v824 = vadd.f32 %v709, %v819
      %v825 = vld [vmem:[%s4] sm:$0x1]
      %v827 = vlaneseq
      %v828 = vshrl.u32 %v827, 7
      %v829 = vsub.s32 0, %v828
      %v830 = vrot.slane %v825, %v829
      %v832 = vadd.f32 %v823, %v830
      %v833 = vadd.f32 %v824, %v830
      %v834 = vmax.f32 %v832, 0.0
      %v835 = vmax.f32 %v833, 0.0
      %836 = vst [vmem:[%s224] sm:$0xff] %v834
      %837 = vst [vmem:[%s224 + $0x8] sm:$0xf] %v835
      %p838 = scmp.lt.s32.totalorder %s16, 1
      %s839 = scalar_select %p838, %s16, 1
      %s840 = smul.addr %s839, 2
      %s841 = smul.addr %s840, 8
      %s842 = scalar_lea.vmem %s5, %s841
      // Predicated region
      $region41: #{conv_x2.1} parent=39 // pred_check
        %p843 = pneg %p144
      $region42: #{conv_x2.1} parent=39 // pred_check_branch
        %845 = sbr.rel (%p843) target = $region44
      $region43: #{conv_x2.1} parent=39 // pred_region
        _
      $region44: #{conv_x2.1} parent=39 // pred_fallthru
        _
    $region40: #{conv_x2.1} parent=5 // pred_fallthru
      _
    %p846 = scmp.le.s32.totalorder 2, %s11
    // Predicated region
    $region45: #{conv_x2.1} parent=5 // pred_check
      %p847 = pneg %p846
    $region46: #{conv_x2.1} parent=5 // pred_check_branch
      %849 = sbr.rel (%p847) target = $region48
    $region47: #{conv_x2.1} parent=5 // pred_region
      %s850 = ssub.s32 %s11, 2
      // Predicated region
      $region49: #{conv_x2.1} parent=47 // pred_check
        %p851 = pneg %p150
      $region50: #{conv_x2.1} parent=47 // pred_check_branch
        %853 = sbr.rel (%p851) target = $region52
      $region51: #{conv_x2.1} parent=47 // pred_region
        %p854 = scmp.lt.s32.totalorder %s17, 1
        %s855 = scalar_select %p854, %s17, 1
        %s856 = smul.addr %s855, 2
        %s857 = smul.addr %s856, 8
        %s858 = scalar_lea.vmem %s5, %s857
      $region52: #{conv_x2.1} parent=47 // pred_fallthru
        _
    $region48: #{conv_x2.1} parent=5 // pred_fallthru
      _
  $region6: #{conv_x2.1} parent=0 // loop_footer
    %s15 = sadd.s32 1, %s11
  $region7: #{conv_x2.1} parent=0 // loop_footer_branch
    %10 = sbr.rel target = $region3
  $region8: #{conv_x2.1} parent=0 // loop_exit
    _

</llo_original>
